<compile_context>
chip_gen: v7x
topology: tpu7x:2x2x1
jax: 0.10.0
libtpu: 0.0.40
codegen_flags: <defaults>
</compile_context>

<pallas_src>
import functools
import math

import jax
import jax.numpy as jnp
from jax import lax
from jax.experimental import pallas as pl
from jax.experimental.pallas import tpu as pltpu

_NEG_INF = float("-inf")


def _mah_kernel(x_ref, wq_ref, wk_ref, wv_ref, att_ref, sim_ref,
                k_sc, v_sc, *maybe_s_sc, tq: int, chunked: bool):
    qi = pl.program_id(1)
    n = k_sc.shape[0]          # total sequence length
    d_v = v_sc.shape[1]

    # K / V projections for the whole sequence, computed once per batch element.
    # (The query-tile grid axis is "arbitrary", so this scratch persists across it.)
    @pl.when(qi == 0)
    def _():
        x_kv = x_ref[0]                                                 # (N, D) compute dtype
        k_sc[...] = jnp.dot(x_kv, wk_ref[...],
                            preferred_element_type=jnp.float32).astype(k_sc.dtype)
        v_sc[...] = jnp.dot(x_kv, wv_ref[...],
                            preferred_element_type=jnp.float32).astype(v_sc.dtype)

    # Q projection for this query tile, sliced from the resident full-seq x block.
    # The 1/sqrt(d_k) scale is already folded into wq in the wrapper.
    row0 = pl.multiple_of(qi * tq, tq)
    q = jnp.dot(x_ref[0, pl.ds(row0, tq), :], wq_ref[...],
                preferred_element_type=jnp.float32).astype(k_sc.dtype)  # (Tq, d_k)

    if chunked:
        # ---- causal prefix skip: only KV chunks 0..qi contribute ------------------
        (s_sc,) = maybe_s_sc
        tk = tq                              # KV chunk size == query tile size
        num_chunks = n // tk

        # Pass 1: f32 scores over the causal prefix into scratch, running row max.
        # Off-diagonal prefix chunks need no mask.
        def score_body(c, m):
            off = pl.multiple_of(c * tk, tk)
            k_c = k_sc[pl.ds(off, tk), :]                               # (tk, d_k)
            s = lax.dot_general(q, k_c, (((1,), (1,)), ((), ())),
                                preferred_element_type=jnp.float32)     # (Tq, tk)
            s_sc[c] = s
            return jnp.maximum(m, jnp.max(s, axis=-1, keepdims=True))

        m = lax.fori_loop(0, qi, score_body,
                          jnp.full((tq, 1), _NEG_INF, jnp.float32))

        # Diagonal chunk: the only one that needs the causal mask.  With tk == tq the
        # mask is purely local (col > row within the tile).
        off_d = pl.multiple_of(qi * tk, tk)
        k_d = k_sc[pl.ds(off_d, tk), :]
        s_d = lax.dot_general(q, k_d, (((1,), (1,)), ((), ())),
                              preferred_element_type=jnp.float32)
        local_row = lax.broadcasted_iota(jnp.int32, (tq, tk), 0)
        local_col = lax.broadcasted_iota(jnp.int32, (tq, tk), 1)
        s_d = jnp.where(local_col > local_row, _NEG_INF, s_d)
        s_sc[qi] = s_d
        m = jnp.maximum(m, jnp.max(s_d, axis=-1, keepdims=True))

        # Pass 2: exp once per element, row sums, P @ V (probs kept f32 in scratch).
        def pv_body(c, carry):
            l, acc = carry
            p = jnp.exp(s_sc[c] - m)                                    # (Tq, tk) f32
            l = l + jnp.sum(p, axis=-1, keepdims=True)
            off = pl.multiple_of(c * tk, tk)
            v_c = v_sc[pl.ds(off, tk), :]                               # (tk, d_v)
            acc = acc + jnp.dot(p.astype(v_c.dtype), v_c,
                                preferred_element_type=jnp.float32)
            s_sc[c] = p
            return l, acc

        l, acc = lax.fori_loop(
            0, qi + 1, pv_body,
            (jnp.zeros((tq, 1), jnp.float32), jnp.zeros((tq, d_v), jnp.float32)))

        # Exact reciprocal: the kernel is writeback-bound, so accuracy here is free
        # (rows of sim sum to 1, no approx-reciprocal drift into att).
        inv_l = 1.0 / l
        att_ref[0] = (acc * inv_l).astype(att_ref.dtype)

        # Pass 3: normalized probabilities into sim; zeros into the masked suffix.
        def norm_body(c, carry):
            off = pl.multiple_of(c * tk, tk)
            sim_ref[0, :, pl.ds(off, tk)] = (s_sc[c] * inv_l).astype(sim_ref.dtype)
            return carry

        lax.fori_loop(0, qi + 1, norm_body, 0)

        zeros_tile = jnp.zeros((tq, tk), sim_ref.dtype)                 # hoisted

        def zero_body(c, carry):
            off = pl.multiple_of(c * tk, tk)
            sim_ref[0, :, pl.ds(off, tk)] = zeros_tile
            return carry

        lax.fori_loop(qi + 1, num_chunks, zero_body, 0)
    else:
        # ---- small-N / single-tile path: full (Tq, N) scores in one shot ----------
        s = lax.dot_general(q, k_sc[...], (((1,), (1,)), ((), ())),
                            preferred_element_type=jnp.float32)         # (Tq, N)
        row = qi * tq + lax.broadcasted_iota(jnp.int32, s.shape, 0)
        col = lax.broadcasted_iota(jnp.int32, s.shape, 1)
        s = jnp.where(col > row, _NEG_INF, s)
        m = jnp.max(s, axis=-1, keepdims=True)
        p = jnp.exp(s - m)
        inv_l = 1.0 / jnp.sum(p, axis=-1, keepdims=True)                # exact reciprocal
        att = jnp.dot(p.astype(v_sc.dtype), v_sc[...],
                      preferred_element_type=jnp.float32) * inv_l
        att_ref[0] = att.astype(att_ref.dtype)
        sim_ref[0] = (p * inv_l).astype(sim_ref.dtype)


def _vmem_budget_bytes() -> int:
    """Generation-aware scoped-VMEM budget with ~15% / 8 MiB compiler headroom."""
    cap = 64 * 1024 * 1024                       # conservative default = v7x per-core VMEM
    try:
        cap = int(pltpu.get_tpu_info().vmem_capacity_bytes)
    except Exception:
        pass
    return min(int(cap * 0.85), cap - 8 * 1024 * 1024)


def _pick_query_tile(n, d, d_k, d_v, cd_bytes, out_bytes, budget):
    """Largest MXU-friendly query tile whose FULL working set fits the VMEM budget."""
    fixed = (2 * n * d * cd_bytes                      # full-seq x block (double buffered)
             + n * (d_k + d_v) * cd_bytes              # K / V scratch
             + 2 * d * (2 * d_k + d_v) * cd_bytes)     # weight blocks (double buffered)
    divisors = [t for t in (1024, 512, 256, 128, 64, 32, 16, 8) if n % t == 0]
    if not divisors:
        return n                                        # single full-extent tile (legal)
    for t in divisors:
        per_tile = (2 * t * n * out_bytes              # sim out block (double buffered)
                    + t * n * 4                        # f32 score/prob scratch
                    + 2 * t * d_v * out_bytes          # att out block (double buffered)
                    + 4 * t * (t + d_k + d_v) * 4)     # in-loop f32 temporaries / slack
        if fixed + per_tile <= budget:
            return t
    return divisors[-1]


def masked_attention_head(x, w_key, w_query, w_value, *, tq: int | None = None,
                          mxu_dtype=None):
    """Pallas implementation of MaskedAttentionHead.forward.

    x       : (B, N, D)
    w_key   : (d_k, D)  torch.nn.Linear weight layout
    w_query : (d_k, D)
    w_value : (d_v, D)
    returns (attention (B, N, d_v), similarity (B, N, N)), both in x.dtype.
    """
    if x.ndim != 3:
        raise ValueError("Expected input tensor to be (B, N_tokens, N_dim).")
    B, N, D = x.shape
    d_k = w_key.shape[0]
    d_v = w_value.shape[0]
    scale = math.sqrt(d_k)

    # MXU operands run in bf16 when x is f32 (2x MXU throughput, half the VMEM for the
    # resident x block and K/V scratch); accumulation and softmax stay f32.
    if mxu_dtype is None:
        mxu_dtype = jnp.bfloat16 if x.dtype == jnp.float32 else x.dtype
    out_dtype = x.dtype
    cd_bytes = jnp.dtype(mxu_dtype).itemsize
    out_bytes = jnp.dtype(out_dtype).itemsize

    budget = _vmem_budget_bytes()
    if tq is None:
        tq = _pick_query_tile(N, D, d_k, d_v, cd_bytes, out_bytes, budget)
    if N % tq != 0:
        raise ValueError(f"query tile tq={tq} must evenly divide N_tokens={N}")
    num_q_tiles = N // tq
    # Chunked causal-prefix-skip path needs >1 query tile and 128-aligned KV chunk offsets.
    chunked = (num_q_tiles > 1) and (tq % 128 == 0)

    # Hoisted one-time weight prep: (in, out) layout so the kernel does plain x @ W, and
    # the softmax scale folded into the query projection.
    wq_t = (jnp.transpose(w_query) / scale).astype(mxu_dtype)  # (D, d_k)
    wk_t = jnp.transpose(w_key).astype(mxu_dtype)              # (D, d_k)
    wv_t = jnp.transpose(w_value).astype(mxu_dtype)            # (D, d_v)
    x_c = x.astype(mxu_dtype)

    scratch_shapes = [
        pltpu.VMEM((N, d_k), mxu_dtype),                       # K for the whole sequence
        pltpu.VMEM((N, d_v), mxu_dtype),                       # V for the whole sequence
    ]
    if chunked:
        # f32 staging for prefix scores / unnormalized probs, one (Tq, Tq) slab per chunk.
        scratch_shapes.append(pltpu.VMEM((num_q_tiles, tq, tq), jnp.float32))

    grid_spec = pltpu.PrefetchScalarGridSpec(
        num_scalar_prefetch=0,
        grid=(B, num_q_tiles),
        in_specs=[
            pl.BlockSpec((1, N, D), lambda b, q: (b, 0, 0)),     # x, full seq (resident)
            pl.BlockSpec((D, d_k), lambda b, q: (0, 0)),         # Wq^T / scale (resident)
            pl.BlockSpec((D, d_k), lambda b, q: (0, 0)),         # Wk^T (resident)
            pl.BlockSpec((D, d_v), lambda b, q: (0, 0)),         # Wv^T (resident)
        ],
        out_specs=[
            pl.BlockSpec((1, tq, d_v), lambda b, q: (b, q, 0)),  # attention
            pl.BlockSpec((1, tq, N), lambda b, q: (b, q, 0)),    # similarity
        ],
        scratch_shapes=scratch_shapes,
    )

    att, sim = pl.pallas_call(
        functools.partial(_mah_kernel, tq=tq, chunked=chunked),
        out_shape=(
            jax.ShapeDtypeStruct((B, N, d_v), out_dtype),
            jax.ShapeDtypeStruct((B, N, N), out_dtype),
        ),
        grid_spec=grid_spec,
        compiler_params=pltpu.CompilerParams(
            dimension_semantics=("parallel", "arbitrary"),
            vmem_limit_bytes=int(budget),
        ),
    )(x_c, wq_t, wk_t, wv_t)
    return att, sim


def _reference(x, w_key, w_query, w_value):
    """Plain-JAX reference mirroring the PyTorch forward."""
    d_k = w_key.shape[0]
    k = x @ w_key.T
    q = x @ w_query.T
    v = x @ w_value.T
    dist = (q @ jnp.swapaxes(k, -1, -2)) / math.sqrt(d_k)
    N = x.shape[1]
    mask = jnp.triu(jnp.ones((N, N), dtype=bool), 1)
    masked = jnp.where(mask[None], -jnp.inf, dist)
    sim = jax.nn.softmax(masked, axis=2)
    att = sim @ v
    return att, sim


def _run_case(key, B, N, D, d_k, d_v, tq=None):
    kx, kk, kq, kv = jax.random.split(key, 4)
    x = jax.random.normal(kx, (B, N, D), dtype=jnp.float32)
    # Deterministic kaiming-uniform-ish init (bound = 1/sqrt(fan_in)), like torch Linear.
    bound = 1.0 / math.sqrt(D)
    w_key = jax.random.uniform(kk, (d_k, D), jnp.float32, -bound, bound)
    w_query = jax.random.uniform(kq, (d_k, D), jnp.float32, -bound, bound)
    w_value = jax.random.uniform(kv, (d_v, D), jnp.float32, -bound, bound)

    att, sim = masked_attention_head(x, w_key, w_query, w_value, tq=tq)
    att = jax.block_until_ready(att)
    sim = jax.block_until_ready(sim)

    att_ref, sim_ref = _reference(x, w_key, w_query, w_value)
    # bf16 MXU operands (f32 accumulation / f32 softmax) vs an f32 reference -> ~1e-2
    # agreement; tolerances set accordingly.
    assert jnp.allclose(att, att_ref, atol=3e-2, rtol=3e-2), f"attention mismatch (N={N})"
    assert jnp.allclose(sim, sim_ref, atol=3e-2, rtol=3e-2), f"similarity mismatch (N={N})"
    # Exact-reciprocal normalization: each softmax row must sum to 1.
    assert jnp.allclose(jnp.sum(sim, axis=-1), 1.0, atol=1e-3), f"row-sum mismatch (N={N})"


if __name__ == "__main__":
    key = jax.random.PRNGKey(0)
    k1, k2 = jax.random.split(key)
    # Small shape consistent with (B, N_tokens, N_dim) -- exercises the single-tile path.
    _run_case(k1, B=2, N=8, D=32, d_k=32, d_v=32)
    # Slightly larger sequence with an explicit 128-row query tile -- exercises the
    # chunked causal-prefix-skip path (2 query tiles, KV chunks of 128).
    _run_case(k2, B=2, N=256, D=32, d_k=32, d_v=32, tq=128)
    print("KERNEL_OK")
</pallas_src>

<mosaic_0001>
module attributes {stable_mosaic.version = 11 : i64} {
  func.func @_mah_kernel(%arg0: i32, %arg1: i32, %arg2: memref<1x8x32xbf16, #tpu.memory_space<vmem>>, %arg3: memref<32x32xbf16, #tpu.memory_space<vmem>>, %arg4: memref<32x32xbf16, #tpu.memory_space<vmem>>, %arg5: memref<32x32xbf16, #tpu.memory_space<vmem>>, %arg6: memref<1x8x32xf32, #tpu.memory_space<vmem>>, %arg7: memref<1x8x8xf32, #tpu.memory_space<vmem>>, %arg8: memref<8x32xbf16, #tpu.memory_space<vmem>>, %arg9: memref<8x32xbf16, #tpu.memory_space<vmem>>) attributes {dimension_semantics = [#tpu.dimension_semantics<parallel>, #tpu.dimension_semantics<arbitrary>], iteration_bounds = array<i64: 2, 1>, scalar_prefetch = 0 : i64, scratch_operands = 2 : i64, tpu.core_type = #tpu.core_type<tc>, window_params = [{transform_indices = @transform_0, window_bounds = array<i64: 1, 8, 32>}, {pipeline_mode = #tpu.pipeline_mode<synchronous>, transform_indices = @transform_1, window_bounds = array<i64: 32, 32>}, {pipeline_mode = #tpu.pipeline_mode<synchronous>, transform_indices = @transform_2, window_bounds = array<i64: 32, 32>}, {pipeline_mode = #tpu.pipeline_mode<synchronous>, transform_indices = @transform_3, window_bounds = array<i64: 32, 32>}, {transform_indices = @transform_4, window_bounds = array<i64: 1, 8, 32>}, {transform_indices = @transform_5, window_bounds = array<i64: 1, 8, 8>}]} {
    %c0_i32 = arith.constant 0 : i32
    %0 = arith.cmpi eq, %arg1, %c0_i32 : i32
    %1 = arith.extui %0 : i1 to i32
    %c0_i32_0 = arith.constant 0 : i32
    %2 = arith.cmpi ne, %1, %c0_i32_0 : i32
    scf.if %2 {
      %c0_21 = arith.constant 0 : index
      %c0_22 = arith.constant 0 : index
      %c0_23 = arith.constant 0 : index
      %43 = vector.load %arg2[%c0_21, %c0_22, %c0_23] : memref<1x8x32xbf16, #tpu.memory_space<vmem>>, vector<1x8x32xbf16>
      %44 = vector.shape_cast %43 : vector<1x8x32xbf16> to vector<8x32xbf16>
      %c0_24 = arith.constant 0 : index
      %c0_25 = arith.constant 0 : index
      %45 = vector.load %arg4[%c0_24, %c0_25] : memref<32x32xbf16, #tpu.memory_space<vmem>>, vector<32x32xbf16>
      %cst_26 = arith.constant dense<0.000000e+00> : vector<8x32xf32>
      %46 = tpu.matmul %44, %45, %cst_26 {dimension_numbers = #tpu.dot_dimension_numbers<[1], [0], [0], [1], [0, 0, 1, 1], [], []>} : vector<8x32xbf16>, vector<32x32xbf16>, vector<8x32xf32> -> vector<8x32xf32>
      %47 = arith.truncf %46 : vector<8x32xf32> to vector<8x32xbf16>
      %c0_27 = arith.constant 0 : index
      %c0_28 = arith.constant 0 : index
      %48 = vector.load %arg8[%c0_27, %c0_28] : memref<8x32xbf16, #tpu.memory_space<vmem>>, vector<8x32xbf16>
      tpu.vector_store %arg8[%c0_27, %c0_28], %47 {strides = array<i32>} : memref<8x32xbf16, #tpu.memory_space<vmem>>, vector<8x32xbf16>,
      %c0_29 = arith.constant 0 : index
      %c0_30 = arith.constant 0 : index
      %49 = vector.load %arg5[%c0_29, %c0_30] : memref<32x32xbf16, #tpu.memory_space<vmem>>, vector<32x32xbf16>
      %cst_31 = arith.constant dense<0.000000e+00> : vector<8x32xf32>
      %50 = tpu.matmul %44, %49, %cst_31 {dimension_numbers = #tpu.dot_dimension_numbers<[1], [0], [0], [1], [0, 0, 1, 1], [], []>} : vector<8x32xbf16>, vector<32x32xbf16>, vector<8x32xf32> -> vector<8x32xf32>
      %51 = arith.truncf %50 : vector<8x32xf32> to vector<8x32xbf16>
      %c0_32 = arith.constant 0 : index
      %c0_33 = arith.constant 0 : index
      %52 = vector.load %arg9[%c0_32, %c0_33] : memref<8x32xbf16, #tpu.memory_space<vmem>>, vector<8x32xbf16>
      tpu.vector_store %arg9[%c0_32, %c0_33], %51 {strides = array<i32>} : memref<8x32xbf16, #tpu.memory_space<vmem>>, vector<8x32xbf16>,
    } else {
    }
    %c8_i32 = arith.constant 8 : i32
    %3 = arith.muli %arg1, %c8_i32 : i32
    %4 = tpu.assume_multiple %3, 8 : i32
    %c0 = arith.constant 0 : index
    %5 = arith.index_cast %4 : i32 to index
    %c0_1 = arith.constant 0 : index
    %6 = vector.load %arg2[%c0, %5, %c0_1] : memref<1x8x32xbf16, #tpu.memory_space<vmem>>, vector<1x8x32xbf16>
    %7 = vector.shape_cast %6 : vector<1x8x32xbf16> to vector<8x32xbf16>
    %c0_2 = arith.constant 0 : index
    %c0_3 = arith.constant 0 : index
    %8 = vector.load %arg3[%c0_2, %c0_3] : memref<32x32xbf16, #tpu.memory_space<vmem>>, vector<32x32xbf16>
    %cst = arith.constant dense<0.000000e+00> : vector<8x32xf32>
    %9 = tpu.matmul %7, %8, %cst {dimension_numbers = #tpu.dot_dimension_numbers<[1], [0], [0], [1], [0, 0, 1, 1], [], []>} : vector<8x32xbf16>, vector<32x32xbf16>, vector<8x32xf32> -> vector<8x32xf32>
    %10 = arith.truncf %9 : vector<8x32xf32> to vector<8x32xbf16>
    %c0_4 = arith.constant 0 : index
    %c0_5 = arith.constant 0 : index
    %11 = vector.load %arg8[%c0_4, %c0_5] : memref<8x32xbf16, #tpu.memory_space<vmem>>, vector<8x32xbf16>
    %cst_6 = arith.constant dense<0.000000e+00> : vector<8x8xf32>
    %12 = tpu.matmul %10, %11, %cst_6 {dimension_numbers = #tpu.dot_dimension_numbers<[1], [1], [0], [0], [0, 0, 1, 0], [], []>} : vector<8x32xbf16>, vector<8x32xbf16>, vector<8x8xf32> -> vector<8x8xf32>
    %c8_i32_7 = arith.constant 8 : i32
    %13 = arith.muli %arg1, %c8_i32_7 : i32
    %14 = tpu.iota {dimensions = array<i32: 0>} : vector<8x8xi32>
    %15 = vector.broadcast %13 : i32 to vector<8x8xi32>
    %16 = arith.addi %15, %14 : vector<8x8xi32>
    %17 = tpu.iota {dimensions = array<i32: 1>} : vector<8x8xi32>
    %18 = arith.cmpi sgt, %17, %16 : vector<8x8xi32>
    %cst_8 = arith.constant 0xFF800000 : f32
    %19 = vector.broadcast %cst_8 : f32 to vector<8x8xf32>
    %20 = arith.select %18, %19, %12 : vector<8x8xi1>, vector<8x8xf32>
    %cst_9 = arith.constant dense<0xFF800000> : vector<8xf32>
    %21 = vector.multi_reduction <maximumf>, %20, %cst_9 [1] : vector<8x8xf32> to vector<8xf32>
    %22 = vector.shape_cast %21 : vector<8xf32> to vector<8x1xf32>
    %23 = vector.broadcast %22 : vector<8x1xf32> to vector<8x8xf32>
    %24 = arith.subf %20, %23 : vector<8x8xf32>
    %25 = math.exp %24 : vector<8x8xf32>
    %cst_10 = arith.constant dense<0.000000e+00> : vector<8xf32>
    %26 = vector.multi_reduction <add>, %25, %cst_10 [1] : vector<8x8xf32> to vector<8xf32>
    %27 = vector.shape_cast %26 : vector<8xf32> to vector<8x1xf32>
    %cst_11 = arith.constant 1.000000e+00 : f32
    %28 = vector.broadcast %cst_11 : f32 to vector<8x1xf32>
    %29 = arith.divf %28, %27 : vector<8x1xf32>
    %30 = arith.truncf %25 : vector<8x8xf32> to vector<8x8xbf16>
    %c0_12 = arith.constant 0 : index
    %c0_13 = arith.constant 0 : index
    %31 = vector.load %arg9[%c0_12, %c0_13] : memref<8x32xbf16, #tpu.memory_space<vmem>>, vector<8x32xbf16>
    %cst_14 = arith.constant dense<0.000000e+00> : vector<8x32xf32>
    %32 = tpu.matmul %30, %31, %cst_14 {dimension_numbers = #tpu.dot_dimension_numbers<[1], [0], [0], [1], [0, 0, 1, 1], [], []>} : vector<8x8xbf16>, vector<8x32xbf16>, vector<8x32xf32> -> vector<8x32xf32>
    %33 = vector.broadcast %29 : vector<8x1xf32> to vector<8x32xf32>
    %34 = arith.mulf %32, %33 : vector<8x32xf32>
    %c0_15 = arith.constant 0 : index
    %c0_16 = arith.constant 0 : index
    %c0_17 = arith.constant 0 : index
    %35 = vector.load %arg6[%c0_15, %c0_16, %c0_17] : memref<1x8x32xf32, #tpu.memory_space<vmem>>, vector<1x8x32xf32>
    %36 = vector.shape_cast %35 : vector<1x8x32xf32> to vector<8x32xf32>
    %37 = vector.shape_cast %34 : vector<8x32xf32> to vector<1x8x32xf32>
    tpu.vector_store %arg6[%c0_15, %c0_16, %c0_17], %37 {strides = array<i32>} : memref<1x8x32xf32, #tpu.memory_space<vmem>>, vector<1x8x32xf32>,
    %38 = vector.broadcast %29 : vector<8x1xf32> to vector<8x8xf32>
    %39 = arith.mulf %25, %38 : vector<8x8xf32>
    %c0_18 = arith.constant 0 : index
    %c0_19 = arith.constant 0 : index
    %c0_20 = arith.constant 0 : index
    %40 = vector.load %arg7[%c0_18, %c0_19, %c0_20] : memref<1x8x8xf32, #tpu.memory_space<vmem>>, vector<1x8x8xf32>
    %41 = vector.shape_cast %40 : vector<1x8x8xf32> to vector<8x8xf32>
    %42 = vector.shape_cast %39 : vector<8x8xf32> to vector<1x8x8xf32>
    tpu.vector_store %arg7[%c0_18, %c0_19, %c0_20], %42 {strides = array<i32>} : memref<1x8x8xf32, #tpu.memory_space<vmem>>, vector<1x8x8xf32>,
    return
  }
  func.func @transform_0(%arg0: i32, %arg1: i32) -> (i32, i32, i32) {
    %c0_i32 = arith.constant 0 : i32
    %c0_i32_0 = arith.constant 0 : i32
    %c0_i32_1 = arith.constant 0 : i32
    return %arg0, %c0_i32, %c0_i32_0 : i32, i32, i32
  }
  func.func @transform_1(%arg0: i32, %arg1: i32) -> (i32, i32) {
    %c0_i32 = arith.constant 0 : i32
    %c0_i32_0 = arith.constant 0 : i32
    %c0_i32_1 = arith.constant 0 : i32
    return %c0_i32, %c0_i32_0 : i32, i32
  }
  func.func @transform_2(%arg0: i32, %arg1: i32) -> (i32, i32) {
    %c0_i32 = arith.constant 0 : i32
    %c0_i32_0 = arith.constant 0 : i32
    %c0_i32_1 = arith.constant 0 : i32
    return %c0_i32, %c0_i32_0 : i32, i32
  }
  func.func @transform_3(%arg0: i32, %arg1: i32) -> (i32, i32) {
    %c0_i32 = arith.constant 0 : i32
    %c0_i32_0 = arith.constant 0 : i32
    %c0_i32_1 = arith.constant 0 : i32
    return %c0_i32, %c0_i32_0 : i32, i32
  }
  func.func @transform_4(%arg0: i32, %arg1: i32) -> (i32, i32, i32) {
    %c0_i32 = arith.constant 0 : i32
    %c0_i32_0 = arith.constant 0 : i32
    return %arg0, %arg1, %c0_i32 : i32, i32, i32
  }
  func.func @transform_5(%arg0: i32, %arg1: i32) -> (i32, i32, i32) {
    %c0_i32 = arith.constant 0 : i32
    %c0_i32_0 = arith.constant 0 : i32
    return %arg0, %arg1, %c0_i32 : i32, i32, i32
  }
}

</mosaic_0001>

<llo_original>
// kernel: tpu_custom_call.1
$region0: #{tpu_custom_call.1}
  #allocation0 [shape = 'u32[]', space=smem, size = 0x4, offset = 0x4, fixed_abs, tag = 'smem constant byte address 0x4 - core index']
  #allocation1 [shape = 'u32[144,128]{1,0:T(1,128)}', space=vmem, size = 0x12000, scoped, tag = 'internal scratch']
  #allocation2 [shape = 'bf16[8,32]{1,0:T(8,128)(2,1)}', space=vmem, size = 0x800, scoped, tag = 'scratch operand']
  #allocation3 [shape = 'bf16[8,32]{1,0:T(8,128)(2,1)}', space=vmem, size = 0x800, scoped, tag = 'scratch operand']
  %s0 = inlined_call_operand.hbm [shape: bf16[2,8,32], index: 0, kind: input, shape index: {}]
  %s1 = inlined_call_operand.hbm [shape: bf16[32,32], index: 1, kind: input, shape index: {}]
  %s2 = inlined_call_operand.hbm [shape: bf16[32,32], index: 2, kind: input, shape index: {}]
  %s3 = inlined_call_operand.hbm [shape: bf16[32,32], index: 3, kind: input, shape index: {}]
  %s4 = inlined_call_operand.hbm [shape: f32[2,8,32], index: 4, kind: output, shape index: {0}]
  %s5 = inlined_call_operand.hbm [shape: f32[2,8,8], index: 5, kind: output, shape index: {1}]
  %6 = xla_tuple %s4, %s5
  %s7 = sld [smem:[#allocation0]]
  $region77: #{tpu_custom_call.1} parent=0
    _
  %s9 = ssub.s32 1, %s7
  %s10 = scalar_select 0, %s9, %s7
  $region1: #{tpu_custom_call.1} parent=0
    #allocation4 [shape = 'u8[4096]{0}', space=vmem, size = 0x1000, scoped, tag = 'input window, operand 0']
    #allocation5 [shape = 's32[2]{0}', space=sflag, size = 0x8, scoped, tag = 'scoped memory for tpu_custom_call.1']
    #allocation6 [shape = 's32[2]{0}', space=sflag, size = 0x8, scoped, tag = 'scoped memory for tpu_custom_call.1']
    #allocation7 [shape = 'u8[8192]{0}', space=vmem, size = 0x2000, scoped, tag = 'input window, operand 1, single buffered']
    #allocation8 [shape = 's32[1]{0}', space=sflag, size = 0x4, scoped, tag = 'scoped memory for tpu_custom_call.1']
    #allocation9 [shape = 'u8[8192]{0}', space=vmem, size = 0x2000, scoped, tag = 'input window, operand 2, single buffered']
    #allocation10 [shape = 'u8[8192]{0}', space=vmem, size = 0x2000, scoped, tag = 'input window, operand 3, single buffered']
    #allocation11 [shape = 's32[1]{0}', space=sflag, size = 0x4, scoped, tag = 'scoped memory for tpu_custom_call.1']
    #allocation12 [shape = 'u8[8192]{0}', space=vmem, size = 0x2000, scoped, tag = 'output window, operand 0']
    #allocation13 [shape = 'u8[8192]{0}', space=vmem, size = 0x2000, scoped, tag = 'output window, operand 1']
    #allocation14 [shape = 's32[2]{0}', space=sflag, size = 0x8, scoped, tag = 'scoped memory for tpu_custom_call.1']
    %11 = vsyncpa [#allocation5], 0
    %s12 = scalar_lea.sflag [#allocation5], 1
    %13 = vsyncpa %s12, 0
    %14 = vsyncpa [#allocation8], 0
    %15 = vsyncpa [#allocation11], 0
    %16 = vsyncpa [#allocation6], 0
    %s17 = scalar_lea.sflag [#allocation6], 1
    %18 = vsyncpa %s17, 0
    %19 = vsyncpa [#allocation14], 0
    %s20 = scalar_lea.sflag [#allocation14], 1
    %21 = vsyncpa %s20, 0
    loop: start=0, step=1, limit=4
    $region2: #{tpu_custom_call.1} parent=1 // loop_pre_header
      _
    $region3: #{tpu_custom_call.1} parent=1 // loop_header
      %s23 = sphi 0, %s27
      %p24 = scmp.ge.s32.totalorder %s23, 4
      %s30 = sphi 0, %s42
      %s31 = sphi 0, %s38
      %s32 = sphi 0, %s30
      %s33 = sphi 0, %s31
      %s34 = sphi 0, %s32
      %s35 = sphi 0, %s33
      %s45 = sphi 0, %s47
      %s48 = sphi 0, %s45
      %s49 = sphi 0, %s48
      %s65 = sphi 0, %s49
      %s69 = sphi 0, %s69
      %s71 = sphi 0, %s69
      %s72 = sphi 0, %s71
      %s86 = sphi 0, %s72
      %s90 = sphi 0, %s90
      %s92 = sphi 0, %s90
      %s93 = sphi 0, %s92
      %s107 = sphi 0, %s93
      %s111 = sphi 0, %s111
      %s113 = sphi 0, %s111
      %s114 = sphi 0, %s113
      %s128 = sphi 0, %s114
      %s136 = sphi 0, %s138
      %s139 = sphi 0, %s136
      %s140 = sphi 0, %s139
      %s156 = sphi 0, %s140
      %s164 = sphi 0, %s166
      %s167 = sphi 0, %s164
      %s168 = sphi 0, %s167
      %s184 = sphi 0, %s168
    $region4: #{tpu_custom_call.1} parent=1 // loop_header_branch
      %26 = sbr.rel (%p24) target = $region8
    $region5: #{tpu_custom_call.1} parent=1 // loop_body
      %s28 = ssub.s32 %s23, 1
      %s29 = ssub.s32 %s23, 2
      %s36 = sadd.s32 1, %s31
      %p37 = scmp.ge.s32.totalorder %s36, 1
      %s38 = scalar_select %p37, 0, %s36
      %s39 = sadd.s32 1, %s30
      %s40 = scalar_select %p37, %s39, %s30
      %p41 = scmp.ge.s32.totalorder %s40, 2
      %s42 = scalar_select %p41, 0, %s40
      %s43 = ssub.s32 %s30, %s42
      %p44 = scmp.eq.s32.totalorder %s43, 0
      %s46 = sadd.s32 %s45, 1
      %s47 = scalar_select %p44, %s45, %s46
      %p50 = pneg %p44
      %p51 = scmp.eq.s32.totalorder %s23, 1
      %p52 = por %p50, %p51
      %p53 = scmp.ne.s32.totalorder %s45, %s48
      %p54 = scmp.eq.s32.totalorder %s23, 0
      %p55 = por %p53, %p54
      %p56 = scmp.ne.s32.totalorder %s45, %s48
      %p57 = scmp.eq.s32.totalorder %s28, 1
      %p58 = por %p56, %p57
      %p59 = scmp.ne.s32.totalorder %s48, %s49
      %p60 = scmp.eq.s32.totalorder %s28, 0
      %p61 = por %p59, %p60
      %p62 = scmp.ne.s32.totalorder %s48, %s49
      %p63 = scmp.eq.s32.totalorder %s29, 1
      %p64 = por %p62, %p63
      %p66 = scmp.ne.s32.totalorder %s49, %s65
      %p67 = scmp.eq.s32.totalorder %s29, 0
      %p68 = por %p66, %p67
      %s70 = sadd.s32 %s69, 1
      %p73 = scmp.eq.s32.totalorder %s23, 1
      %p74 = scmp.ne.s32.totalorder %s69, %s71
      %p75 = scmp.eq.s32.totalorder %s23, 0
      %p76 = por %p74, %p75
      %p77 = scmp.ne.s32.totalorder %s69, %s71
      %p78 = scmp.eq.s32.totalorder %s28, 1
      %p79 = por %p77, %p78
      %p80 = scmp.ne.s32.totalorder %s71, %s72
      %p81 = scmp.eq.s32.totalorder %s28, 0
      %p82 = por %p80, %p81
      %p83 = scmp.ne.s32.totalorder %s71, %s72
      %p84 = scmp.eq.s32.totalorder %s29, 1
      %p85 = por %p83, %p84
      %p87 = scmp.ne.s32.totalorder %s72, %s86
      %p88 = scmp.eq.s32.totalorder %s29, 0
      %p89 = por %p87, %p88
      %s91 = sadd.s32 %s90, 1
      %p94 = scmp.eq.s32.totalorder %s23, 1
      %p95 = scmp.ne.s32.totalorder %s90, %s92
      %p96 = scmp.eq.s32.totalorder %s23, 0
      %p97 = por %p95, %p96
      %p98 = scmp.ne.s32.totalorder %s90, %s92
      %p99 = scmp.eq.s32.totalorder %s28, 1
      %p100 = por %p98, %p99
      %p101 = scmp.ne.s32.totalorder %s92, %s93
      %p102 = scmp.eq.s32.totalorder %s28, 0
      %p103 = por %p101, %p102
      %p104 = scmp.ne.s32.totalorder %s92, %s93
      %p105 = scmp.eq.s32.totalorder %s29, 1
      %p106 = por %p104, %p105
      %p108 = scmp.ne.s32.totalorder %s93, %s107
      %p109 = scmp.eq.s32.totalorder %s29, 0
      %p110 = por %p108, %p109
      %s112 = sadd.s32 %s111, 1
      %p115 = scmp.eq.s32.totalorder %s23, 1
      %p116 = scmp.ne.s32.totalorder %s111, %s113
      %p117 = scmp.eq.s32.totalorder %s23, 0
      %p118 = por %p116, %p117
      %p119 = scmp.ne.s32.totalorder %s111, %s113
      %p120 = scmp.eq.s32.totalorder %s28, 1
      %p121 = por %p119, %p120
      %p122 = scmp.ne.s32.totalorder %s113, %s114
      %p123 = scmp.eq.s32.totalorder %s28, 0
      %p124 = por %p122, %p123
      %p125 = scmp.ne.s32.totalorder %s113, %s114
      %p126 = scmp.eq.s32.totalorder %s29, 1
      %p127 = por %p125, %p126
      %p129 = scmp.ne.s32.totalorder %s114, %s128
      %p130 = scmp.eq.s32.totalorder %s29, 0
      %p131 = por %p129, %p130
      %s132 = ssub.s32 %s30, %s42
      %s133 = ssub.s32 %s31, %s38
      %s134 = sor.u32 %s132, %s133
      %p135 = scmp.eq.s32.totalorder %s134, 0
      %s137 = sadd.s32 %s136, 1
      %s138 = scalar_select %p135, %s136, %s137
      %p141 = pneg %p135
      %p142 = scmp.eq.s32.totalorder %s23, 1
      %p143 = por %p141, %p142
      %p144 = scmp.ne.s32.totalorder %s136, %s139
      %p145 = scmp.eq.s32.totalorder %s23, 0
      %p146 = por %p144, %p145
      %p147 = scmp.ne.s32.totalorder %s136, %s139
      %p148 = scmp.eq.s32.totalorder %s28, 1
      %p149 = por %p147, %p148
      %p150 = scmp.ne.s32.totalorder %s139, %s140
      %p151 = scmp.eq.s32.totalorder %s28, 0
      %p152 = por %p150, %p151
      %p153 = scmp.ne.s32.totalorder %s139, %s140
      %p154 = scmp.eq.s32.totalorder %s29, 1
      %p155 = por %p153, %p154
      %p157 = scmp.ne.s32.totalorder %s140, %s156
      %p158 = scmp.eq.s32.totalorder %s29, 0
      %p159 = por %p157, %p158
      %s160 = ssub.s32 %s30, %s42
      %s161 = ssub.s32 %s31, %s38
      %s162 = sor.u32 %s160, %s161
      %p163 = scmp.eq.s32.totalorder %s162, 0
      %s165 = sadd.s32 %s164, 1
      %s166 = scalar_select %p163, %s164, %s165
      %p169 = pneg %p163
      %p170 = scmp.eq.s32.totalorder %s23, 1
      %p171 = por %p169, %p170
      %p172 = scmp.ne.s32.totalorder %s164, %s167
      %p173 = scmp.eq.s32.totalorder %s23, 0
      %p174 = por %p172, %p173
      %p175 = scmp.ne.s32.totalorder %s164, %s167
      %p176 = scmp.eq.s32.totalorder %s28, 1
      %p177 = por %p175, %p176
      %p178 = scmp.ne.s32.totalorder %s167, %s168
      %p179 = scmp.eq.s32.totalorder %s28, 0
      %p180 = por %p178, %p179
      %p181 = scmp.ne.s32.totalorder %s167, %s168
      %p182 = scmp.eq.s32.totalorder %s29, 1
      %p183 = por %p181, %p182
      %p185 = scmp.ne.s32.totalorder %s168, %s184
      %p186 = scmp.eq.s32.totalorder %s29, 0
      %p187 = por %p185, %p186
      %p188 = scmp.le.s32.totalorder 1, %s23
      %p189 = scmp.lt.s32.totalorder %s23, 3
      %p190 = pnand %p188, %p189
      %p191 = pneg %p190
      // Predicated region
      $region9: #{tpu_custom_call.1} parent=5 // pred_check
        _
      $region10: #{tpu_custom_call.1} parent=5 // pred_check_branch
        %193 = sbr.rel (%p190) target = $region12
      $region11: #{tpu_custom_call.1} parent=5 // pred_region
        %s194 = ssub.s32 %s23, 1
        // Predicated region
        $region13: #{tpu_custom_call.1} parent=11 // pred_check
          %p195 = pneg %p82
        $region14: #{tpu_custom_call.1} parent=11 // pred_check_branch
          %197 = sbr.rel (%p195) target = $region16
        $region15: #{tpu_custom_call.1} parent=11 // pred_region
          %s199 = ssub.s32 256, 256
          %200 = vsyncadd [#allocation8], %s199
          %s201 = sshll.u32 [#allocation7], 4
          %s202 = int_to_ptr.vmem [resolvable:$true] %s201
          %207 = dma.hbm_to_vmem [thread:$0]  %s1, 256, %s202, [#allocation8], 64, 64, 4
        $region16: #{tpu_custom_call.1} parent=11 // pred_fallthru
          _
        // Predicated region
        $region17: #{tpu_custom_call.1} parent=11 // pred_check
          %p208 = pneg %p103
        $region18: #{tpu_custom_call.1} parent=11 // pred_check_branch
          %210 = sbr.rel (%p208) target = $region20
        $region19: #{tpu_custom_call.1} parent=11 // pred_region
          %s212 = ssub.s32 256, 256
          %213 = vsyncadd [#allocation8], %s212
          %s214 = sshll.u32 [#allocation9], 4
          %s215 = int_to_ptr.vmem [resolvable:$true] %s214
          %220 = dma.hbm_to_vmem [thread:$0]  %s2, 256, %s215, [#allocation8], 64, 64, 4
        $region20: #{tpu_custom_call.1} parent=11 // pred_fallthru
          _
        // Predicated region
        $region21: #{tpu_custom_call.1} parent=11 // pred_check
          %p221 = pneg %p124
        $region22: #{tpu_custom_call.1} parent=11 // pred_check_branch
          %223 = sbr.rel (%p221) target = $region24
        $region23: #{tpu_custom_call.1} parent=11 // pred_region
          %s225 = ssub.s32 256, 256
          %226 = vsyncadd [#allocation11], %s225
          %s227 = sshll.u32 [#allocation10], 4
          %s228 = int_to_ptr.vmem [resolvable:$true] %s227
          %233 = dma.hbm_to_vmem [thread:$0]  %s3, 256, %s228, [#allocation11], 64, 64, 4
        $region24: #{tpu_custom_call.1} parent=11 // pred_fallthru
          _
      $region12: #{tpu_custom_call.1} parent=5 // pred_fallthru
        _
      %p234 = scmp.lt.s32.totalorder %s23, 2
      // Predicated region
      $region25: #{tpu_custom_call.1} parent=5 // pred_check
        %p235 = pneg %p234
      $region26: #{tpu_custom_call.1} parent=5 // pred_check_branch
        %237 = sbr.rel (%p235) target = $region28
      $region27: #{tpu_custom_call.1} parent=5 // pred_region
        // Predicated region
        $region29: #{tpu_custom_call.1} parent=27 // pred_check
          %p238 = pneg %p55
        $region30: #{tpu_custom_call.1} parent=27 // pred_check_branch
          %240 = sbr.rel (%p238) target = $region32
        $region31: #{tpu_custom_call.1} parent=27 // pred_region
          %s241 = sand.u32 %s45, 1
          %s242 = scalar_lea.sflag [#allocation5], %s241
          %s243 = sand.u32 %s45, 1
          %s244 = smul.addr %s243, 4
          %s245 = scalar_lea.vmem [#allocation4], %s244
          %s247 = ssub.s32 64, 64
          %248 = vsyncadd %s242, %s247
          %s249 = smul.addr %s30, 64
          %s250 = scalar_lea.hbm %s0, %s249
          %s252 = sshll.u32 %s245, 4
          %s253 = int_to_ptr.vmem [resolvable:$true] %s252
          %255 = dma.hbm_to_vmem [thread:$0]  %s250, 64, %s253, %s242
        $region32: #{tpu_custom_call.1} parent=27 // pred_fallthru
          _
      $region28: #{tpu_custom_call.1} parent=5 // pred_fallthru
        _
      %p256 = scmp.le.s32.totalorder 1, %s23
      %p257 = scmp.lt.s32.totalorder %s23, 3
      %p258 = pnand %p256, %p257
      %p259 = pneg %p258
      // Predicated region
      $region33: #{tpu_custom_call.1} parent=5 // pred_check
        _
      $region34: #{tpu_custom_call.1} parent=5 // pred_check_branch
        %261 = sbr.rel (%p258) target = $region36
      $region35: #{tpu_custom_call.1} parent=5 // pred_region
        %s262 = ssub.s32 %s23, 1
        %s263 = sand.u32 %s48, 1
        %s264 = scalar_lea.sflag [#allocation5], %s263
        %s265 = sand.u32 %s48, 1
        %s266 = smul.addr %s265, 4
        %s267 = scalar_lea.vmem [#allocation4], %s266
        // Predicated region
        $region37: #{tpu_custom_call.1} parent=35 // pred_check
          %p268 = pneg %p61
        $region38: #{tpu_custom_call.1} parent=35 // pred_check_branch
          %270 = sbr.rel (%p268) target = $region40
        $region39: #{tpu_custom_call.1} parent=35 // pred_region
          %271 = dma.done %s264, 64
        $region40: #{tpu_custom_call.1} parent=35 // pred_fallthru
          _
        // Predicated region
        $region41: #{tpu_custom_call.1} parent=35 // pred_check
          %p272 = pneg %p82
        $region42: #{tpu_custom_call.1} parent=35 // pred_check_branch
          %274 = sbr.rel (%p272) target = $region44
        $region43: #{tpu_custom_call.1} parent=35 // pred_region
          %275 = dma.done [#allocation8], 256
        $region44: #{tpu_custom_call.1} parent=35 // pred_fallthru
          _
        // Predicated region
        $region45: #{tpu_custom_call.1} parent=35 // pred_check
          %p276 = pneg %p103
        $region46: #{tpu_custom_call.1} parent=35 // pred_check_branch
          %278 = sbr.rel (%p276) target = $region48
        $region47: #{tpu_custom_call.1} parent=35 // pred_region
          %279 = dma.done [#allocation8], 256
        $region48: #{tpu_custom_call.1} parent=35 // pred_fallthru
          _
        // Predicated region
        $region49: #{tpu_custom_call.1} parent=35 // pred_check
          %p280 = pneg %p124
        $region50: #{tpu_custom_call.1} parent=35 // pred_check_branch
          %282 = sbr.rel (%p280) target = $region52
        $region51: #{tpu_custom_call.1} parent=35 // pred_region
          %283 = dma.done [#allocation11], 256
        $region52: #{tpu_custom_call.1} parent=35 // pred_fallthru
          _
        %s284 = sand.u32 %s48, 1
        %s285 = scalar_lea.sflag [#allocation5], %s284
        %s286 = sand.u32 %s48, 1
        %s287 = smul.addr %s286, 4
        %s288 = scalar_lea.vmem [#allocation4], %s287
        %p289 = pneg %p61
        %p290 = pneg %p58
        %p291 = pneg %p82
        %p292 = pneg %p79
        %p293 = pneg %p103
        %p294 = pneg %p100
        %p295 = pneg %p124
        %p296 = pneg %p121
        %p297 = pneg %p152
        %p298 = pneg %p149
        %s299 = sand.u32 %s139, 1
        %s300 = scalar_lea.sflag [#allocation6], %s299
        %s301 = sand.u32 %s139, 1
        %s302 = smul.addr %s301, 8
        %s303 = scalar_lea.vmem [#allocation12], %s302
        %p304 = pneg %p180
        %p305 = pneg %p177
        %s306 = sand.u32 %s167, 1
        %s307 = scalar_lea.sflag [#allocation14], %s306
        %s308 = sand.u32 %s167, 1
        %s309 = smul.addr %s308, 8
        %s310 = scalar_lea.vmem [#allocation13], %s309
        %p312 = scmp.eq.s32.totalorder %s33, 0
        // Predicated region
        $region53: #{tpu_custom_call.1} parent=35 // pred_check
          %p313 = pneg %p312
        $region54: #{tpu_custom_call.1} parent=35 // pred_check_branch
          %315 = sbr.rel (%p313) target = $region56
        $region55: #{tpu_custom_call.1} parent=35 // pred_region
          %v316 = vld [vmem:[%s267] sm:$0xf]
          %v317 = vld [vmem:[#allocation9] sm:$0xf]
          %v318 = vld [vmem:[#allocation9 + $0x4] sm:$0xf]
          %v319 = vld [vmem:[#allocation9 + $0x8] sm:$0xf]
          %v320 = vld [vmem:[#allocation9 + $0xc] sm:$0xf]
          %v325 = vunpack.c.l.b16 %v317
          %v326 = vunpack.c.l.b16 %v318
          %v327 = vunpack.c.l.b16 %v319
          %v328 = vunpack.c.l.b16 %v320
          %v329 = vpack.c.b16 %v326, %v325
          %v330 = vpack.c.b16 %v328, %v327
          %vm333 = vcmask 261120
          %v335 = vsel %vm333, %v316, 0
          %337 = vmatprep.subr.bf16.mxu0 0
          %338 = vmatpush1.bf16.msra.mxu0 %v329
          %339 = vmatprep.subr.bf16.mxu0 0
          %340 = vmatpush1.bf16.msra.mxu0 %v330
          %341 = vmatprep.subr.bf16.mxu0 0
          %342 = vmatpush1.bf16.msra.mxu0 0
          %343 = vmatprep.subr.bf16.mxu0 0
          %344 = vmatpush1.bf16.msra.mxu0 0
          %345 = vmatprep.subr.bf16.mxu0 0
          %346 = vmatpush1.bf16.msra.mxu0 0
          %347 = vmatprep.subr.bf16.mxu0 0
          %348 = vmatpush1.bf16.msra.mxu0 0
          %349 = vmatprep.subr.bf16.mxu0 0
          %350 = vmatpush1.bf16.msra.mxu0 0
          %351 = vmatprep.subr.bf16.mxu0 0
          %352 = vmatpush1.bf16.msra.mxu0 0
          %353 = vmatprep.subr.bf16.mxu0 0
          %354 = vmatpush1.bf16.msra.mxu0 0
          %355 = vmatprep.subr.bf16.mxu0 0
          %356 = vmatpush1.bf16.msra.mxu0 0
          %357 = vmatprep.subr.bf16.mxu0 0
          %358 = vmatpush1.bf16.msra.mxu0 0
          %359 = vmatprep.subr.bf16.mxu0 0
          %360 = vmatpush1.bf16.msra.mxu0 0
          %361 = vmatprep.subr.bf16.mxu0 0
          %362 = vmatpush1.bf16.msra.mxu0 0
          %363 = vmatprep.subr.bf16.mxu0 0
          %364 = vmatpush1.bf16.msra.mxu0 0
          %365 = vmatprep.subr.bf16.mxu0 0
          %366 = vmatpush1.bf16.msra.mxu0 0
          %367 = vmatprep.subr.bf16.mxu0 0
          %368 = vmatpush1.bf16.msra.mxu0 0
          %369 = vmatprep.mubr.bf16.mxu0 0
          %370 = vmatmul.mubr.bf16.gmra.mrb[0].mxu0 %v335
          %v371 = vpop.f32.mrb[0].mxu0
          %v372 = vadd.f32 0.0, %v371
          %v373 = vpop.f32.mrb[0].mxu0
          %v374 = vpop.f32.mrb[0].mxu0
          %v375 = vpop.f32.mrb[0].mxu0
          %376 = vdwg.mxu0
          %v377 = vpack.c.bf16 %v372, %v372
          %vm378 = vcmask 257024
          %379 = vst.msk [vmem:[#allocation2] sm:$0xf] %vm378, %v377
          %v380 = vld [vmem:[#allocation10] sm:$0xf]
          %v381 = vld [vmem:[#allocation10 + $0x4] sm:$0xf]
          %v382 = vld [vmem:[#allocation10 + $0x8] sm:$0xf]
          %v383 = vld [vmem:[#allocation10 + $0xc] sm:$0xf]
          %v388 = vunpack.c.l.b16 %v380
          %v389 = vunpack.c.l.b16 %v381
          %v390 = vunpack.c.l.b16 %v382
          %v391 = vunpack.c.l.b16 %v383
          %v392 = vpack.c.b16 %v389, %v388
          %v393 = vpack.c.b16 %v391, %v390
          %396 = vmatprep.subr.bf16.mxu0 0
          %397 = vmatpush1.bf16.msra.mxu0 %v392
          %398 = vmatprep.subr.bf16.mxu0 0
          %399 = vmatpush1.bf16.msra.mxu0 %v393
          %400 = vmatprep.subr.bf16.mxu0 0
          %401 = vmatpush1.bf16.msra.mxu0 0
          %402 = vmatprep.subr.bf16.mxu0 0
          %403 = vmatpush1.bf16.msra.mxu0 0
          %404 = vmatprep.subr.bf16.mxu0 0
          %405 = vmatpush1.bf16.msra.mxu0 0
          %406 = vmatprep.subr.bf16.mxu0 0
          %407 = vmatpush1.bf16.msra.mxu0 0
          %408 = vmatprep.subr.bf16.mxu0 0
          %409 = vmatpush1.bf16.msra.mxu0 0
          %410 = vmatprep.subr.bf16.mxu0 0
          %411 = vmatpush1.bf16.msra.mxu0 0
          %412 = vmatprep.subr.bf16.mxu0 0
          %413 = vmatpush1.bf16.msra.mxu0 0
          %414 = vmatprep.subr.bf16.mxu0 0
          %415 = vmatpush1.bf16.msra.mxu0 0
          %416 = vmatprep.subr.bf16.mxu0 0
          %417 = vmatpush1.bf16.msra.mxu0 0
          %418 = vmatprep.subr.bf16.mxu0 0
          %419 = vmatpush1.bf16.msra.mxu0 0
          %420 = vmatprep.subr.bf16.mxu0 0
          %421 = vmatpush1.bf16.msra.mxu0 0
          %422 = vmatprep.subr.bf16.mxu0 0
          %423 = vmatpush1.bf16.msra.mxu0 0
          %424 = vmatprep.subr.bf16.mxu0 0
          %425 = vmatpush1.bf16.msra.mxu0 0
          %426 = vmatprep.subr.bf16.mxu0 0
          %427 = vmatpush1.bf16.msra.mxu0 0
          %428 = vmatprep.mubr.bf16.mxu0 0
          %429 = vmatmul.mubr.bf16.gmra.mrb[0].mxu0 %v335
          %v430 = vpop.f32.mrb[0].mxu0
          %v431 = vadd.f32 0.0, %v430
          %v432 = vpop.f32.mrb[0].mxu0
          %v433 = vpop.f32.mrb[0].mxu0
          %v434 = vpop.f32.mrb[0].mxu0
          %435 = vdwg.mxu0
          %v436 = vpack.c.bf16 %v431, %v431
          %437 = vst.msk [vmem:[#allocation3] sm:$0xf] %vm378, %v436
        $region56: #{tpu_custom_call.1} parent=35 // pred_fallthru
          _
        %s438 = smul.u32 %s33, 8
        %s439 = sshra.s32 %s438, 3
        %s440 = sand.u32 %s438, 7
        %s441 = smul.addr %s439, 4
        %s442 = scalar_lea.vmem %s267, %s441 [#allocation4]
        %v443 = vld [vmem:[%s442] sm:$0xf]
        %v444 = vld [vmem:[#allocation7] sm:$0xf]
        %v445 = vld [vmem:[#allocation7 + $0x4] sm:$0xf]
        %v446 = vld [vmem:[#allocation7 + $0x8] sm:$0xf]
        %v447 = vld [vmem:[#allocation7 + $0xc] sm:$0xf]
        %v452 = vunpack.c.l.b16 %v444
        %v453 = vunpack.c.l.b16 %v445
        %v454 = vunpack.c.l.b16 %v446
        %v455 = vunpack.c.l.b16 %v447
        %v456 = vpack.c.b16 %v453, %v452
        %v457 = vpack.c.b16 %v455, %v454
        %vm460 = vcmask 261120
        %v462 = vsel %vm460, %v443, 0
        %464 = vmatprep.subr.bf16.mxu0 0
        %465 = vmatpush1.bf16.msra.mxu0 %v456
        %466 = vmatprep.subr.bf16.mxu0 0
        %467 = vmatpush1.bf16.msra.mxu0 %v457
        %468 = vmatprep.subr.bf16.mxu0 0
        %469 = vmatpush1.bf16.msra.mxu0 0
        %470 = vmatprep.subr.bf16.mxu0 0
        %471 = vmatpush1.bf16.msra.mxu0 0
        %472 = vmatprep.subr.bf16.mxu0 0
        %473 = vmatpush1.bf16.msra.mxu0 0
        %474 = vmatprep.subr.bf16.mxu0 0
        %475 = vmatpush1.bf16.msra.mxu0 0
        %476 = vmatprep.subr.bf16.mxu0 0
        %477 = vmatpush1.bf16.msra.mxu0 0
        %478 = vmatprep.subr.bf16.mxu0 0
        %479 = vmatpush1.bf16.msra.mxu0 0
        %480 = vmatprep.subr.bf16.mxu0 0
        %481 = vmatpush1.bf16.msra.mxu0 0
        %482 = vmatprep.subr.bf16.mxu0 0
        %483 = vmatpush1.bf16.msra.mxu0 0
        %484 = vmatprep.subr.bf16.mxu0 0
        %485 = vmatpush1.bf16.msra.mxu0 0
        %486 = vmatprep.subr.bf16.mxu0 0
        %487 = vmatpush1.bf16.msra.mxu0 0
        %488 = vmatprep.subr.bf16.mxu0 0
        %489 = vmatpush1.bf16.msra.mxu0 0
        %490 = vmatprep.subr.bf16.mxu0 0
        %491 = vmatpush1.bf16.msra.mxu0 0
        %492 = vmatprep.subr.bf16.mxu0 0
        %493 = vmatpush1.bf16.msra.mxu0 0
        %494 = vmatprep.subr.bf16.mxu0 0
        %495 = vmatpush1.bf16.msra.mxu0 0
        %496 = vmatprep.mubr.bf16.mxu0 0
        %497 = vmatmul.mubr.bf16.gmra.mrb[0].mxu0 %v462
        %v498 = vpop.f32.mrb[0].mxu0
        %v499 = vadd.f32 0.0, %v498
        %v500 = vpop.f32.mrb[0].mxu0
        %v501 = vpop.f32.mrb[0].mxu0
        %v502 = vpop.f32.mrb[0].mxu0
        %503 = vdwg.mxu0
        %v504 = vpack.c.bf16 %v499, %v499
        %v505 = vld [vmem:[#allocation2] sm:$0xf]
        %v507 = vsel %vm460, %v504, 0
        %v510 = vsel %vm460, %v505, 0
        %512 = vmatprep.subr.bf16.mxu0 0
        %513 = vmatpush1.bf16.xpose.msra.mxu0 %v510
        %514 = vmatprep.subr.bf16.mxu0 0
        %515 = vmatpush1.bf16.xpose.msra.mxu0 0
        %516 = vmatprep.subr.bf16.mxu0 0
        %517 = vmatpush1.bf16.xpose.msra.mxu0 0
        %518 = vmatprep.subr.bf16.mxu0 0
        %519 = vmatpush1.bf16.xpose.msra.mxu0 0
        %520 = vmatprep.subr.bf16.mxu0 0
        %521 = vmatpush1.bf16.xpose.msra.mxu0 0
        %522 = vmatprep.subr.bf16.mxu0 0
        %523 = vmatpush1.bf16.xpose.msra.mxu0 0
        %524 = vmatprep.subr.bf16.mxu0 0
        %525 = vmatpush1.bf16.xpose.msra.mxu0 0
        %526 = vmatprep.subr.bf16.mxu0 0
        %527 = vmatpush1.bf16.xpose.msra.mxu0 0
        %528 = vmatprep.subr.bf16.mxu0 0
        %529 = vmatpush1.bf16.xpose.msra.mxu0 0
        %530 = vmatprep.subr.bf16.mxu0 0
        %531 = vmatpush1.bf16.xpose.msra.mxu0 0
        %532 = vmatprep.subr.bf16.mxu0 0
        %533 = vmatpush1.bf16.xpose.msra.mxu0 0
        %534 = vmatprep.subr.bf16.mxu0 0
        %535 = vmatpush1.bf16.xpose.msra.mxu0 0
        %536 = vmatprep.subr.bf16.mxu0 0
        %537 = vmatpush1.bf16.xpose.msra.mxu0 0
        %538 = vmatprep.subr.bf16.mxu0 0
        %539 = vmatpush1.bf16.xpose.msra.mxu0 0
        %540 = vmatprep.subr.bf16.mxu0 0
        %541 = vmatpush1.bf16.xpose.msra.mxu0 0
        %542 = vmatprep.subr.bf16.mxu0 0
        %543 = vmatpush1.bf16.xpose.msra.mxu0 0
        %544 = vmatprep.mubr.bf16.mxu0 0
        %545 = vmatmul.mubr.bf16.gmra.mrb[0].mxu0 %v507
        %v546 = vpop.f32.mrb[0].mxu0
        %v547 = vadd.f32 0.0, %v546
        %v548 = vpop.f32.mrb[0].mxu0
        %v549 = vpop.f32.mrb[0].mxu0
        %v550 = vpop.f32.mrb[0].mxu0
        %551 = vdwg.mxu0
        %v552 = vlaneseq
        %v553 = vshrl.u32 %v552, 7
        %v554 = vstv %s438
        %v555 = vadd.s32 %v554, %v553
        %v556 = vlaneseq
        %v557 = vand.u32 %v556, 127
        %vm558 = vcmp.gt.s32.totalorder %v557, %v555
        %v559 = vsel %vm558, -inf, %v547
        %vm560 = vcmask 64512
        %v561 = vsel %vm560, %v559, -inf
        %562 = vmax.xlane.f32.xlu0 %v561
        %v563 = vpop.xlane.xlu0 %562
        %v564 = vsub.f32 %v559, %v563
        %v565 = vmul.f32 %v564, 1.442695
        %v566 = vpow.pop %v565
        %v567 = vsel %vm560, %v566, 0.0
        %568 = vadd.xlane.f32.xlu0 %v567
        %v569 = vpop.xlane.xlu0 %568
        %v570 = vrcp.pop %v569
        %v571 = vmul.f32 1.0, %v570
        %v572 = vpack.c.bf16 %v566, %v566
        %v573 = vld [vmem:[#allocation3] sm:$0xf]
        %v575 = vsel %vm560, %v572, 0
        %vm577 = vcmask 1043456
        %v579 = vsel %vm577, %v573, 0
        %581 = vmatprep.subr.bf16.mxu0 0
        %582 = vmatpush1.bf16.msra.mxu0 %v579
        %583 = vmatprep.subr.bf16.mxu0 0
        %584 = vmatpush1.bf16.msra.mxu0 0
        %585 = vmatprep.subr.bf16.mxu0 0
        %586 = vmatpush1.bf16.msra.mxu0 0
        %587 = vmatprep.subr.bf16.mxu0 0
        %588 = vmatpush1.bf16.msra.mxu0 0
        %589 = vmatprep.subr.bf16.mxu0 0
        %590 = vmatpush1.bf16.msra.mxu0 0
        %591 = vmatprep.subr.bf16.mxu0 0
        %592 = vmatpush1.bf16.msra.mxu0 0
        %593 = vmatprep.subr.bf16.mxu0 0
        %594 = vmatpush1.bf16.msra.mxu0 0
        %595 = vmatprep.subr.bf16.mxu0 0
        %596 = vmatpush1.bf16.msra.mxu0 0
        %597 = vmatprep.subr.bf16.mxu0 0
        %598 = vmatpush1.bf16.msra.mxu0 0
        %599 = vmatprep.subr.bf16.mxu0 0
        %600 = vmatpush1.bf16.msra.mxu0 0
        %601 = vmatprep.subr.bf16.mxu0 0
        %602 = vmatpush1.bf16.msra.mxu0 0
        %603 = vmatprep.subr.bf16.mxu0 0
        %604 = vmatpush1.bf16.msra.mxu0 0
        %605 = vmatprep.subr.bf16.mxu0 0
        %606 = vmatpush1.bf16.msra.mxu0 0
        %607 = vmatprep.subr.bf16.mxu0 0
        %608 = vmatpush1.bf16.msra.mxu0 0
        %609 = vmatprep.subr.bf16.mxu0 0
        %610 = vmatpush1.bf16.msra.mxu0 0
        %611 = vmatprep.subr.bf16.mxu0 0
        %612 = vmatpush1.bf16.msra.mxu0 0
        %613 = vmatprep.mubr.bf16.mxu0 0
        %614 = vmatmul.mubr.bf16.gmra.mrb[0].mxu0 %v575
        %v615 = vpop.f32.mrb[0].mxu0
        %v616 = vadd.f32 0.0, %v615
        %v617 = vpop.f32.mrb[0].mxu0
        %v618 = vpop.f32.mrb[0].mxu0
        %v619 = vpop.f32.mrb[0].mxu0
        %620 = vdwg.mxu0
        %v621 = vmul.f32 %v616, %v571
        %622 = vst.msk [vmem:[%s303] sm:$0xff] %vm460, %v621
        %v623 = vmul.f32 %v566, %v571
        %624 = vst.msk [vmem:[%s310] sm:$0xff] %vm560, %v623
        %s625 = sand.u32 %s139, 1
        %s626 = scalar_lea.sflag [#allocation6], %s625
        %s627 = sand.u32 %s139, 1
        %s628 = smul.addr %s627, 8
        %s629 = scalar_lea.vmem [#allocation12], %s628
        %s630 = sand.u32 %s167, 1
        %s631 = scalar_lea.sflag [#allocation14], %s630
        %s632 = sand.u32 %s167, 1
        %s633 = smul.addr %s632, 8
        %s634 = scalar_lea.vmem [#allocation13], %s633
        // Predicated region
        $region57: #{tpu_custom_call.1} parent=35 // pred_check
          %p635 = pneg %p149
        $region58: #{tpu_custom_call.1} parent=35 // pred_check_branch
          %637 = sbr.rel (%p635) target = $region60
        $region59: #{tpu_custom_call.1} parent=35 // pred_region
          %s639 = ssub.s32 128, 128
          %640 = vsyncadd %s626, %s639
          %s641 = sadd.s32 %s33, %s32
          %s642 = smul.addr %s641, 128
          %s643 = scalar_lea.hbm %s4, %s642
          %s645 = sshll.u32 %s629, 4
          %s646 = int_to_ptr.vmem [resolvable:$true] %s645
          %648 = dma.vmem_to_hbm [thread:$0]  %s646, 128, %s643, %s626
        $region60: #{tpu_custom_call.1} parent=35 // pred_fallthru
          _
        // Predicated region
        $region61: #{tpu_custom_call.1} parent=35 // pred_check
          %p649 = pneg %p177
        $region62: #{tpu_custom_call.1} parent=35 // pred_check_branch
          %651 = sbr.rel (%p649) target = $region64
        $region63: #{tpu_custom_call.1} parent=35 // pred_region
          %s653 = ssub.s32 128, 128
          %654 = vsyncadd %s631, %s653
          %s655 = sadd.s32 %s33, %s32
          %s656 = smul.addr %s655, 128
          %s657 = scalar_lea.hbm %s5, %s656
          %s659 = sshll.u32 %s634, 4
          %s660 = int_to_ptr.vmem [resolvable:$true] %s659
          %662 = dma.vmem_to_hbm [thread:$0]  %s660, 128, %s657, %s631
        $region64: #{tpu_custom_call.1} parent=35 // pred_fallthru
          _
      $region36: #{tpu_custom_call.1} parent=5 // pred_fallthru
        _
      %p663 = scmp.le.s32.totalorder 2, %s23
      // Predicated region
      $region65: #{tpu_custom_call.1} parent=5 // pred_check
        %p664 = pneg %p663
      $region66: #{tpu_custom_call.1} parent=5 // pred_check_branch
        %666 = sbr.rel (%p664) target = $region68
      $region67: #{tpu_custom_call.1} parent=5 // pred_region
        %s667 = ssub.s32 %s23, 2
        // Predicated region
        $region69: #{tpu_custom_call.1} parent=67 // pred_check
          %p668 = pneg %p155
        $region70: #{tpu_custom_call.1} parent=67 // pred_check_branch
          %670 = sbr.rel (%p668) target = $region72
        $region71: #{tpu_custom_call.1} parent=67 // pred_region
          %s671 = sand.u32 %s140, 1
          %s672 = scalar_lea.sflag [#allocation6], %s671
          %s673 = sand.u32 %s140, 1
          %s674 = smul.addr %s673, 8
          %s675 = scalar_lea.vmem [#allocation12], %s674
          %676 = dma.done %s672, 128
        $region72: #{tpu_custom_call.1} parent=67 // pred_fallthru
          _
        // Predicated region
        $region73: #{tpu_custom_call.1} parent=67 // pred_check
          %p677 = pneg %p183
        $region74: #{tpu_custom_call.1} parent=67 // pred_check_branch
          %679 = sbr.rel (%p677) target = $region76
        $region75: #{tpu_custom_call.1} parent=67 // pred_region
          %s680 = sand.u32 %s168, 1
          %s681 = scalar_lea.sflag [#allocation14], %s680
          %s682 = sand.u32 %s168, 1
          %s683 = smul.addr %s682, 8
          %s684 = scalar_lea.vmem [#allocation13], %s683
          %685 = dma.done %s681, 128
        $region76: #{tpu_custom_call.1} parent=67 // pred_fallthru
          _
      $region68: #{tpu_custom_call.1} parent=5 // pred_fallthru
        _
    $region6: #{tpu_custom_call.1} parent=1 // loop_footer
      %s27 = sadd.s32 1, %s23
    $region7: #{tpu_custom_call.1} parent=1 // loop_footer_branch
      %22 = sbr.rel target = $region3
    $region8: #{tpu_custom_call.1} parent=1 // loop_exit
      _
    %686 = vsyncpa [#allocation5], 1
    %s687 = scalar_lea.sflag [#allocation5], 1
    %688 = vsyncpa %s687, 1
    %689 = vsyncpa [#allocation8], 1
    %690 = vsyncpa [#allocation11], 1
    %691 = vsyncpa [#allocation6], 1
    %s692 = scalar_lea.sflag [#allocation6], 1
    %693 = vsyncpa %s692, 1
    %694 = vsyncpa [#allocation14], 1
    %s695 = scalar_lea.sflag [#allocation14], 1
    %696 = vsyncpa %s695, 1

</llo_original>
